<compile_context>
chip_gen: v7x
topology: tpu7x:2x2x1
jax: 0.10.0
libtpu: 0.0.40
codegen_flags: <defaults>
</compile_context>

<pallas_src>
import jax
import jax.numpy as jnp
import numpy as np
from jax.experimental import pallas as pl
from jax.experimental.pallas import tpu as pltpu


def _cdiv(a, b):
    return -(-a // b)


def _round_up(a, b):
    return _cdiv(a, b) * b


def _sgcn_kernel(x_ref, w1_ref, b1_ref, w2_ref, b2_ref, o_ref):
    """(TB, V*Cin) time-slab block -> (TB, V*C1) output block.

    Both st_gcn layers (1x1 conv + graph contraction, BN folded into layer 1) were pre-folded
    into dense operators in the wrapper, so this is two weight-stationary matmuls.
    """
    h = x_ref[...].astype(w1_ref.dtype)                                  # in-kernel cast to MXU dtype
    y1 = jnp.dot(h, w1_ref[...], preferred_element_type=jnp.float32)    # (TB, V*C1) f32 acc
    z = jnp.maximum(y1 + b1_ref[...], 0.0)                               # bias + ReLU in f32
    y2 = jnp.dot(z.astype(w2_ref.dtype), w2_ref[...],
                 preferred_element_type=jnp.float32)
    o_ref[...] = jnp.maximum(y2 + b2_ref[...], 0.0).astype(o_ref.dtype)


def _choose_block_rows(NT, block_rows):
    """Pick the per-step row-slab size.

    Multiple of 256 (bf16 sublane packing + full 256-wide MXU passes), at most `block_rows`,
    and when NT is large enough prefer an even number of grid steps (v7x megacore)."""
    if NT <= 256:
        return _round_up(NT, 16)            # single block, minimal sublane padding
    steps = _cdiv(NT, block_rows)
    if steps % 2 == 1:
        steps += 1                          # even grid -> both v7x TensorCores get equal work
    return min(block_rows, max(256, _round_up(_cdiv(NT, steps), 256)))


def sgcn_pallas(x, A, imp1, imp2, Wc1, bc1, Wc2, bc2, gamma, beta, rmean, rvar,
                eps=1e-5, compute_dtype=jnp.bfloat16, out_dtype=None, block_rows=4096):
    """x: (N, T, V, C) as passed to SGCN.forward (M == 1 after unsqueeze).

    compute_dtype: MXU operand dtype (bf16 recommended on v5e/v6e/v7x; accumulation is f32).
    out_dtype:     output dtype; default x.dtype (set jnp.bfloat16 to halve HBM writeback).
    block_rows:    max time-slab rows per grid step (use ~2048 if VMEM is very tight)."""
    N, T, V, C = x.shape
    K = A.shape[0]
    C1 = Wc1.shape[0] // K
    VC, VC1 = V * C, V * C1
    out_dtype = x.dtype if out_dtype is None else jnp.dtype(out_dtype)

    # ---- BatchNorm1d (eval) as per-(v, c) affine; BN channel index is v*C + c. ----
    inv = gamma / jnp.sqrt(rvar + eps)
    bn_scale = inv.reshape(V, C)
    bn_shift = (beta - rmean * inv).reshape(V, C)

    # ---- Fold 1x1 conv + graph contraction into one dense operator per layer. ----
    # Reference per (n, t) slab: out[w, c1] = sum_k sum_v Aeff[k,v,w] * (sum_c h[v,c]*W[k,c1,c] + b[k,c1])
    W1t = jnp.transpose(Wc1[:, :, 0, 0].reshape(K, C1, C), (0, 2, 1))    # (K, Cin, C1)
    W2t = jnp.transpose(Wc2[:, :, 0, 0].reshape(K, C1, C1), (0, 2, 1))   # (K, C1, C1)
    A1t = jnp.transpose(A * imp1, (0, 2, 1))                             # A1t[k,w,v] = Aeff[k,v,w]
    A2t = jnp.transpose(A * imp2, (0, 2, 1))

    # B[(v,c),(w,c1)] = sum_k A_t[k,w,v] * W_t[k,c,c1]; row-major (v outer / c inner,
    # w outer / c1 inner) matches x.reshape(NT, V*C) and out.reshape(NT, V, C1).
    B1_raw = jnp.einsum('kwv,kcd->vcwd', A1t, W1t).reshape(VC, VC1)      # (V*Cin, V*C1)
    B2 = jnp.einsum('kwv,kcd->vcwd', A2t, W2t).reshape(VC1, VC1)         # (V*C1, V*C1)
    bias1 = jnp.einsum('kwv,kd->wd', A1t, bc1.reshape(K, C1)).reshape(1, VC1)
    bias2 = jnp.einsum('kwv,kd->wd', A2t, bc2.reshape(K, C1)).reshape(1, VC1)

    # ---- Fold BN into the layer-1 operator (exact: BN is affine, layer 1 is linear). ----
    bias1 = bias1 + bn_shift.reshape(1, VC) @ B1_raw
    B1 = B1_raw * bn_scale.reshape(VC, 1)

    # ---- Time-slab grid; ragged trailing block handled by Pallas masking (no pad/slice). ----
    NT = N * T
    tb = _choose_block_rows(NT, block_rows)
    grid_n = _cdiv(NT, tb)

    x_slab = x.reshape(NT, VC)                      # metadata-only reshape; no dtype pass over x

    x_itemsize = x.dtype.itemsize
    o_itemsize = jnp.dtype(out_dtype).itemsize
    w_itemsize = jnp.dtype(compute_dtype).itemsize
    w_bytes = (VC * VC1 + VC1 * VC1) * w_itemsize + 2 * VC1 * 4

    # VMEM budget: double-buffered x/out blocks + double-buffered (but fetched-once) weights.
    vmem_limit = 2 * tb * (VC * x_itemsize + VC1 * o_itemsize) + 2 * w_bytes + (4 << 20)
    vmem_limit = max(min(vmem_limit, 48 << 20), 16 << 20)   # stay well under v7x's 64 MiB/TC

    cost = pl.CostEstimate(
        flops=2 * NT * (VC * VC1 + VC1 * VC1),
        transcendentals=0,
        bytes_accessed=NT * (VC * x_itemsize + VC1 * o_itemsize) + w_bytes,
    )

    out = pl.pallas_call(
        _sgcn_kernel,
        out_shape=jax.ShapeDtypeStruct((NT, VC1), out_dtype),
        grid_spec=pltpu.PrefetchScalarGridSpec(
            num_scalar_prefetch=0,
            grid=(grid_n,),
            in_specs=[
                pl.BlockSpec((tb, VC), lambda i: (i, 0)),      # time-batched input slab
                pl.BlockSpec((VC, VC1), lambda i: (0, 0)),     # folded layer-1 operator (stationary)
                pl.BlockSpec((1, VC1), lambda i: (0, 0)),      # folded layer-1 bias (f32)
                pl.BlockSpec((VC1, VC1), lambda i: (0, 0)),    # folded layer-2 operator (stationary)
                pl.BlockSpec((1, VC1), lambda i: (0, 0)),      # folded layer-2 bias (f32)
            ],
            out_specs=pl.BlockSpec((tb, VC1), lambda i: (i, 0)),   # lane-dense: VC1 % 128 == 0
        ),
        compiler_params=pltpu.CompilerParams(
            dimension_semantics=("parallel",),
            vmem_limit_bytes=int(vmem_limit),
        ),
        cost_estimate=cost,
    )(x_slab,
      B1.astype(compute_dtype), bias1.astype(jnp.float32),
      B2.astype(compute_dtype), bias2.astype(jnp.float32))

    return out.reshape(N, T, V, C1)                          # == (N*M, T, V, C_out)


def sgcn_reference(x, A, imp1, imp2, Wc1, bc1, Wc2, bc2, gamma, beta, rmean, rvar, eps=1e-5):
    """Plain-JAX mirror of the PyTorch forward (NCHW conventions)."""
    N, T, V, C = x.shape
    K = A.shape[0]
    Cout = Wc1.shape[0] // K
    x5 = x[..., None]                                   # (N, T, V, C, 1)
    x5 = jnp.transpose(x5, (0, 3, 1, 2, 4))             # (N, C, T, V, M)
    M = x5.shape[-1]
    x5 = jnp.transpose(x5, (0, 4, 3, 1, 2))             # (N, M, V, C, T)
    xb = x5.reshape(N * M, V * C, T)
    inv = gamma / jnp.sqrt(rvar + eps)
    xb = (xb - rmean[None, :, None]) * inv[None, :, None] + beta[None, :, None]
    xb = xb.reshape(N, M, V, C, T)
    xb = jnp.transpose(xb, (0, 1, 3, 4, 2)).reshape(N * M, C, T, V)

    def st_gcn_layer(xin, Wc, bc, Aeff):
        n = xin.shape[0]
        y = jnp.einsum('nctv,oc->notv', xin, Wc[:, :, 0, 0]) + bc[None, :, None, None]
        y = y.reshape(n, K, Cout, T, V)
        out = jnp.einsum('nkctv,kvw->nctw', y, Aeff)
        return jnp.maximum(out, 0.0)

    h = st_gcn_layer(xb, Wc1, bc1, A * imp1)
    h = st_gcn_layer(h, Wc2, bc2, A * imp2)
    return jnp.transpose(h, (0, 2, 3, 1))               # (N*M, T, V, Cout)


if __name__ == "__main__":
    # Small, forward-consistent shapes: x is (N, T, V, C_in); M becomes 1 via unsqueeze.
    N, T, V, Cin, Cout, K = 2, 8, 16, 4, 32, 3

    key = jax.random.PRNGKey(0)
    ks = jax.random.split(key, 10)
    x = jax.random.normal(ks[0], (N, T, V, Cin), jnp.float32)

    # Deterministic synthetic graph adjacency (K, V, V), row-normalized.
    A_raw = jax.random.uniform(ks[1], (K, V, V), jnp.float32)
    A = A_raw / jnp.sum(A_raw, axis=-1, keepdims=True)

    # edge_importance init in the module is torch.ones(A.size()) per layer.
    imp1 = jnp.ones((K, V, V), jnp.float32)
    imp2 = jnp.ones((K, V, V), jnp.float32)

    # ConvTemporalGraphical 1x1 conv params: (K*Cout, Cin, 1, 1) / (K*Cout,)
    Wc1 = 0.1 * jax.random.normal(ks[2], (K * Cout, Cin, 1, 1), jnp.float32)
    bc1 = 0.1 * jax.random.normal(ks[3], (K * Cout,), jnp.float32)
    Wc2 = 0.1 * jax.random.normal(ks[4], (K * Cout, Cout, 1, 1), jnp.float32)
    bc2 = 0.1 * jax.random.normal(ks[5], (K * Cout,), jnp.float32)

    # BatchNorm1d(Cin * V) params / running stats (eval-mode semantics).
    gamma = 1.0 + 0.1 * jax.random.normal(ks[6], (V * Cin,), jnp.float32)
    beta = 0.1 * jax.random.normal(ks[7], (V * Cin,), jnp.float32)
    rmean = 0.1 * jax.random.normal(ks[8], (V * Cin,), jnp.float32)
    rvar = 1.0 + 0.1 * jax.random.uniform(ks[9], (V * Cin,), jnp.float32)

    ref = sgcn_reference(x, A, imp1, imp2, Wc1, bc1, Wc2, bc2, gamma, beta, rmean, rvar)
    ref = jax.block_until_ready(ref)

    # f32 compute path (tight check).
    out_f32 = sgcn_pallas(x, A, imp1, imp2, Wc1, bc1, Wc2, bc2, gamma, beta, rmean, rvar,
                          compute_dtype=jnp.float32)
    out_f32 = jax.block_until_ready(out_f32)
    np.testing.assert_allclose(np.asarray(out_f32), np.asarray(ref), rtol=3e-2, atol=3e-3)

    # bf16 operands, f32 output (production default; f32 accumulation in-kernel).
    out_bf16 = sgcn_pallas(x, A, imp1, imp2, Wc1, bc1, Wc2, bc2, gamma, beta, rmean, rvar,
                           compute_dtype=jnp.bfloat16)
    out_bf16 = jax.block_until_ready(out_bf16)
    np.testing.assert_allclose(np.asarray(out_bf16), np.asarray(ref), rtol=5e-2, atol=2e-2)

    # bf16 operands + bf16 output (opt-in: halves HBM writeback on the mem-bound v6e/v7x path).
    out_bf16_io = sgcn_pallas(x, A, imp1, imp2, Wc1, bc1, Wc2, bc2, gamma, beta, rmean, rvar,
                              compute_dtype=jnp.bfloat16, out_dtype=jnp.bfloat16)
    out_bf16_io = jax.block_until_ready(out_bf16_io)
    np.testing.assert_allclose(np.asarray(out_bf16_io, dtype=np.float32), np.asarray(ref),
                               rtol=8e-2, atol=3e-2)

    print("KERNEL_OK")
</pallas_src>

<mosaic_0001>
module attributes {stable_mosaic.version = 11 : i64} {
  func.func @_sgcn_kernel(%arg0: i32, %arg1: memref<16x64xf32, #tpu.memory_space<vmem>>, %arg2: memref<64x512xf32, #tpu.memory_space<vmem>>, %arg3: memref<1x512xf32, #tpu.memory_space<vmem>>, %arg4: memref<512x512xf32, #tpu.memory_space<vmem>>, %arg5: memref<1x512xf32, #tpu.memory_space<vmem>>, %arg6: memref<16x512xf32, #tpu.memory_space<vmem>>) attributes {dimension_semantics = [#tpu.dimension_semantics<parallel>], iteration_bounds = array<i64: 1>, scalar_prefetch = 0 : i64, scratch_operands = 0 : i64, tpu.core_type = #tpu.core_type<tc>, window_params = [{transform_indices = @transform_0, window_bounds = array<i64: 16, 64>}, {pipeline_mode = #tpu.pipeline_mode<synchronous>, transform_indices = @transform_1, window_bounds = array<i64: 64, 512>}, {pipeline_mode = #tpu.pipeline_mode<synchronous>, transform_indices = @transform_2, window_bounds = array<i64: 1, 512>}, {pipeline_mode = #tpu.pipeline_mode<synchronous>, transform_indices = @transform_3, window_bounds = array<i64: 512, 512>}, {pipeline_mode = #tpu.pipeline_mode<synchronous>, transform_indices = @transform_4, window_bounds = array<i64: 1, 512>}, {transform_indices = @transform_5, window_bounds = array<i64: 16, 512>}]} {
    %c0 = arith.constant 0 : index
    %c0_0 = arith.constant 0 : index
    %0 = vector.load %arg1[%c0, %c0_0] : memref<16x64xf32, #tpu.memory_space<vmem>>, vector<16x64xf32>
    %c0_1 = arith.constant 0 : index
    %c0_2 = arith.constant 0 : index
    %1 = vector.load %arg2[%c0_1, %c0_2] : memref<64x512xf32, #tpu.memory_space<vmem>>, vector<64x512xf32>
    %cst = arith.constant dense<0.000000e+00> : vector<16x512xf32>
    %2 = tpu.matmul %0, %1, %cst {dimension_numbers = #tpu.dot_dimension_numbers<[1], [0], [0], [1], [0, 0, 1, 1], [], []>} : vector<16x64xf32>, vector<64x512xf32>, vector<16x512xf32> -> vector<16x512xf32>
    %c0_3 = arith.constant 0 : index
    %c0_4 = arith.constant 0 : index
    %3 = vector.load %arg3[%c0_3, %c0_4] : memref<1x512xf32, #tpu.memory_space<vmem>>, vector<1x512xf32>
    %4 = vector.broadcast %3 : vector<1x512xf32> to vector<16x512xf32>
    %5 = arith.addf %2, %4 : vector<16x512xf32>
    %cst_5 = arith.constant 0.000000e+00 : f32
    %6 = vector.broadcast %cst_5 : f32 to vector<16x512xf32>
    %7 = arith.maximumf %5, %6 : vector<16x512xf32>
    %c0_6 = arith.constant 0 : index
    %c0_7 = arith.constant 0 : index
    %8 = vector.load %arg4[%c0_6, %c0_7] : memref<512x512xf32, #tpu.memory_space<vmem>>, vector<512x512xf32>
    %cst_8 = arith.constant dense<0.000000e+00> : vector<16x512xf32>
    %9 = tpu.matmul %7, %8, %cst_8 {dimension_numbers = #tpu.dot_dimension_numbers<[1], [0], [0], [1], [0, 0, 1, 1], [], []>} : vector<16x512xf32>, vector<512x512xf32>, vector<16x512xf32> -> vector<16x512xf32>
    %c0_9 = arith.constant 0 : index
    %c0_10 = arith.constant 0 : index
    %10 = vector.load %arg5[%c0_9, %c0_10] : memref<1x512xf32, #tpu.memory_space<vmem>>, vector<1x512xf32>
    %11 = vector.broadcast %10 : vector<1x512xf32> to vector<16x512xf32>
    %12 = arith.addf %9, %11 : vector<16x512xf32>
    %cst_11 = arith.constant 0.000000e+00 : f32
    %13 = vector.broadcast %cst_11 : f32 to vector<16x512xf32>
    %14 = arith.maximumf %12, %13 : vector<16x512xf32>
    %c0_12 = arith.constant 0 : index
    %c0_13 = arith.constant 0 : index
    %15 = vector.load %arg6[%c0_12, %c0_13] : memref<16x512xf32, #tpu.memory_space<vmem>>, vector<16x512xf32>
    tpu.vector_store %arg6[%c0_12, %c0_13], %14 {strides = array<i32>} : memref<16x512xf32, #tpu.memory_space<vmem>>, vector<16x512xf32>,
    return
  }
  func.func @transform_0(%arg0: i32) -> (i32, i32) {
    %c0_i32 = arith.constant 0 : i32
    %c0_i32_0 = arith.constant 0 : i32
    return %arg0, %c0_i32 : i32, i32
  }
  func.func @transform_1(%arg0: i32) -> (i32, i32) {
    %c0_i32 = arith.constant 0 : i32
    %c0_i32_0 = arith.constant 0 : i32
    %c0_i32_1 = arith.constant 0 : i32
    return %c0_i32, %c0_i32_0 : i32, i32
  }
  func.func @transform_2(%arg0: i32) -> (i32, i32) {
    %c0_i32 = arith.constant 0 : i32
    %c0_i32_0 = arith.constant 0 : i32
    %c0_i32_1 = arith.constant 0 : i32
    return %c0_i32, %c0_i32_0 : i32, i32
  }
  func.func @transform_3(%arg0: i32) -> (i32, i32) {
    %c0_i32 = arith.constant 0 : i32
    %c0_i32_0 = arith.constant 0 : i32
    %c0_i32_1 = arith.constant 0 : i32
    return %c0_i32, %c0_i32_0 : i32, i32
  }
  func.func @transform_4(%arg0: i32) -> (i32, i32) {
    %c0_i32 = arith.constant 0 : i32
    %c0_i32_0 = arith.constant 0 : i32
    %c0_i32_1 = arith.constant 0 : i32
    return %c0_i32, %c0_i32_0 : i32, i32
  }
  func.func @transform_5(%arg0: i32) -> (i32, i32) {
    %c0_i32 = arith.constant 0 : i32
    %c0_i32_0 = arith.constant 0 : i32
    return %arg0, %c0_i32 : i32, i32
  }
}

</mosaic_0001>

<llo_original>
// kernel: tpu_custom_call.1
$region0: #{tpu_custom_call.1}
  #allocation0 [shape = 'u32[]', space=smem, size = 0x4, offset = 0x4, fixed_abs, tag = 'smem constant byte address 0x4 - core index']
  #allocation1 [shape = 'u32[144,128]{1,0:T(1,128)}', space=vmem, size = 0x12000, scoped, tag = 'internal scratch']
  %s0 = inlined_call_operand.hbm [shape: f32[16,64], index: 0, kind: input, shape index: {}]
  %s1 = inlined_call_operand.hbm [shape: f32[64,512], index: 1, kind: input, shape index: {}]
  %s2 = inlined_call_operand.vmem [shape: f32[1,512], index: 2, kind: input, shape index: {}]
  %s3 = inlined_call_operand.hbm [shape: f32[512,512], index: 3, kind: input, shape index: {}]
  %s4 = inlined_call_operand.vmem [shape: f32[1,512], index: 4, kind: input, shape index: {}]
  %s5 = inlined_call_operand.hbm [shape: f32[16,512], index: 5, kind: output, shape index: {}]
  %s6 = sld [smem:[#allocation0]]
  $region42: #{tpu_custom_call.1} parent=0
    _
  %s8 = ssub.s32 1, %s6
  %s9 = scalar_select 0, %s8, %s6
  $region1: #{tpu_custom_call.1} parent=0
    #allocation2 [shape = 'u8[8192]{0}', space=vmem, size = 0x2000, scoped, tag = 'input window, operand 0, single buffered']
    #allocation3 [shape = 's32[1]{0}', space=sflag, size = 0x4, scoped, tag = 'scoped memory for tpu_custom_call.1']
    #allocation4 [shape = 's32[1]{0}', space=sflag, size = 0x4, scoped, tag = 'scoped memory for tpu_custom_call.1']
    #allocation5 [shape = 'u8[131072]{0}', space=vmem, size = 0x20000, scoped, tag = 'input window, operand 1, single buffered']
    #allocation6 [shape = 's32[1]{0}', space=sflag, size = 0x4, scoped, tag = 'scoped memory for tpu_custom_call.1']
    #allocation7 [shape = 'u8[1048576]{0}', space=vmem, size = 0x100000, scoped, tag = 'input window, operand 3, single buffered']
    #allocation8 [shape = 'u8[32768]{0}', space=vmem, size = 0x8000, scoped, tag = 'output window, operand 0, single buffered']
    %10 = vsyncpa [#allocation3], 0
    %11 = vsyncpa [#allocation6], 0
    %12 = vsyncpa [#allocation4], 0
    // Predicated region
    $region2: #{tpu_custom_call.1} parent=1 // pred_check
      _
    $region3: #{tpu_custom_call.1} parent=1 // pred_check_branch
      %14 = sbr.rel (0) target = $region5
    $region4: #{tpu_custom_call.1} parent=1 // pred_region
      %s16 = ssub.s32 256, 256
      %17 = vsyncadd [#allocation3], %s16
      %s18 = sshll.u32 [#allocation2], 4
      %s19 = int_to_ptr.vmem [resolvable:$true] %s18
      %24 = dma.hbm_to_vmem [thread:$0]  %s0, 256, %s19, [#allocation3], 128, 128, 8
    $region5: #{tpu_custom_call.1} parent=1 // pred_fallthru
      _
    // Predicated region
    $region6: #{tpu_custom_call.1} parent=1 // pred_check
      _
    $region7: #{tpu_custom_call.1} parent=1 // pred_check_branch
      %26 = sbr.rel (0) target = $region9
    $region8: #{tpu_custom_call.1} parent=1 // pred_region
      %s28 = ssub.s32 4096, 4096
      %29 = vsyncadd [#allocation6], %s28
      %s30 = sshll.u32 [#allocation5], 4
      %s31 = int_to_ptr.vmem [resolvable:$true] %s30
      %36 = dma.hbm_to_vmem [thread:$0]  %s1, 4096, %s31, [#allocation6], 512, 512, 32
    $region9: #{tpu_custom_call.1} parent=1 // pred_fallthru
      _
    // Predicated region
    $region10: #{tpu_custom_call.1} parent=1 // pred_check
      _
    $region11: #{tpu_custom_call.1} parent=1 // pred_check_branch
      %38 = sbr.rel (0) target = $region13
    $region12: #{tpu_custom_call.1} parent=1 // pred_region
      _
    $region13: #{tpu_custom_call.1} parent=1 // pred_fallthru
      _
    // Predicated region
    $region14: #{tpu_custom_call.1} parent=1 // pred_check
      _
    $region15: #{tpu_custom_call.1} parent=1 // pred_check_branch
      %40 = sbr.rel (0) target = $region17
    $region16: #{tpu_custom_call.1} parent=1 // pred_region
      %s42 = ssub.s32 32768, 32768
      %43 = vsyncadd [#allocation6], %s42
      %s44 = sshll.u32 [#allocation7], 4
      %s45 = int_to_ptr.vmem [resolvable:$true] %s44
      %50 = dma.hbm_to_vmem [thread:$0]  %s3, 32768, %s45, [#allocation6], 512, 512, 32
    $region17: #{tpu_custom_call.1} parent=1 // pred_fallthru
      _
    // Predicated region
    $region18: #{tpu_custom_call.1} parent=1 // pred_check
      _
    $region19: #{tpu_custom_call.1} parent=1 // pred_check_branch
      %52 = sbr.rel (0) target = $region21
    $region20: #{tpu_custom_call.1} parent=1 // pred_region
      _
    $region21: #{tpu_custom_call.1} parent=1 // pred_fallthru
      _
    // Predicated region
    $region22: #{tpu_custom_call.1} parent=1 // pred_check
      _
    $region23: #{tpu_custom_call.1} parent=1 // pred_check_branch
      %54 = sbr.rel (0) target = $region25
    $region24: #{tpu_custom_call.1} parent=1 // pred_region
      %55 = dma.done [#allocation3], 256
    $region25: #{tpu_custom_call.1} parent=1 // pred_fallthru
      _
    // Predicated region
    $region26: #{tpu_custom_call.1} parent=1 // pred_check
      _
    $region27: #{tpu_custom_call.1} parent=1 // pred_check_branch
      %57 = sbr.rel (0) target = $region29
    $region28: #{tpu_custom_call.1} parent=1 // pred_region
      %58 = dma.done [#allocation6], 4096
    $region29: #{tpu_custom_call.1} parent=1 // pred_fallthru
      _
    // Predicated region
    $region30: #{tpu_custom_call.1} parent=1 // pred_check
      _
    $region31: #{tpu_custom_call.1} parent=1 // pred_check_branch
      %60 = sbr.rel (0) target = $region33
    $region32: #{tpu_custom_call.1} parent=1 // pred_region
      %61 = dma.done [#allocation6], 32768
    $region33: #{tpu_custom_call.1} parent=1 // pred_fallthru
      _
    %v62 = vld [vmem:[#allocation2] sm:$0xff]
    %v63 = vld [vmem:[#allocation2 + $0x8] sm:$0xff]
    %v64 = vld [vmem:[#allocation5] sm:$0xff]
    %v65 = vld [vmem:[#allocation5 + $0x8] sm:$0xff]
    %v66 = vld [vmem:[#allocation5 + $0x10] sm:$0xff]
    %v67 = vld [vmem:[#allocation5 + $0x18] sm:$0xff]
    %v68 = vld [vmem:[#allocation5 + $0x20] sm:$0xff]
    %v69 = vld [vmem:[#allocation5 + $0x28] sm:$0xff]
    %v70 = vld [vmem:[#allocation5 + $0x30] sm:$0xff]
    %v71 = vld [vmem:[#allocation5 + $0x38] sm:$0xff]
    %v72 = vld [vmem:[#allocation5 + $0x40] sm:$0xff]
    %v73 = vld [vmem:[#allocation5 + $0x48] sm:$0xff]
    %v74 = vld [vmem:[#allocation5 + $0x50] sm:$0xff]
    %v75 = vld [vmem:[#allocation5 + $0x58] sm:$0xff]
    %v76 = vld [vmem:[#allocation5 + $0x60] sm:$0xff]
    %v77 = vld [vmem:[#allocation5 + $0x68] sm:$0xff]
    %v78 = vld [vmem:[#allocation5 + $0x70] sm:$0xff]
    %v79 = vld [vmem:[#allocation5 + $0x78] sm:$0xff]
    %v80 = vld [vmem:[#allocation5 + $0x80] sm:$0xff]
    %v81 = vld [vmem:[#allocation5 + $0x88] sm:$0xff]
    %v82 = vld [vmem:[#allocation5 + $0x90] sm:$0xff]
    %v83 = vld [vmem:[#allocation5 + $0x98] sm:$0xff]
    %v84 = vld [vmem:[#allocation5 + $0xa0] sm:$0xff]
    %v85 = vld [vmem:[#allocation5 + $0xa8] sm:$0xff]
    %v86 = vld [vmem:[#allocation5 + $0xb0] sm:$0xff]
    %v87 = vld [vmem:[#allocation5 + $0xb8] sm:$0xff]
    %v88 = vld [vmem:[#allocation5 + $0xc0] sm:$0xff]
    %v89 = vld [vmem:[#allocation5 + $0xc8] sm:$0xff]
    %v90 = vld [vmem:[#allocation5 + $0xd0] sm:$0xff]
    %v91 = vld [vmem:[#allocation5 + $0xd8] sm:$0xff]
    %v92 = vld [vmem:[#allocation5 + $0xe0] sm:$0xff]
    %v93 = vld [vmem:[#allocation5 + $0xe8] sm:$0xff]
    %v94 = vld [vmem:[#allocation5 + $0xf0] sm:$0xff]
    %v95 = vld [vmem:[#allocation5 + $0xf8] sm:$0xff]
    %v96 = vld [vmem:[%s2] sm:$0xf]
    %v98 = vlaneseq
    %v99 = vshrl.u32 %v98, 7
    %v100 = vsub.s32 0, %v99
    %v101 = vrot.slane %v96, %v100
    %v102 = vlaneseq
    %v103 = vshrl.u32 %v102, 7
    %v104 = vsub.s32 1, %v103
    %v105 = vrot.slane %v96, %v104
    %v106 = vlaneseq
    %v107 = vshrl.u32 %v106, 7
    %v108 = vsub.s32 2, %v107
    %v109 = vrot.slane %v96, %v108
    %v110 = vlaneseq
    %v111 = vshrl.u32 %v110, 7
    %v112 = vsub.s32 3, %v111
    %v113 = vrot.slane %v96, %v112
    %vm118 = vcmask 523264
    %v120 = vsel %vm118, %v62, 0
    %v123 = vsel %vm118, %v63, 0
    %125 = vmatprep.subr.mxu0 %v65
    %126 = vmatpush1.msra.mxu0 %v64
    %127 = vmatprep.subr.mxu0 %v69
    %128 = vmatpush1.msra.mxu0 %v68
    %129 = vmatprep.subr.mxu0 %v73
    %130 = vmatpush1.msra.mxu0 %v72
    %131 = vmatprep.subr.mxu0 %v77
    %132 = vmatpush1.msra.mxu0 %v76
    %133 = vmatprep.subr.mxu0 %v81
    %134 = vmatpush1.msra.mxu0 %v80
    %135 = vmatprep.subr.mxu0 %v85
    %136 = vmatpush1.msra.mxu0 %v84
    %137 = vmatprep.subr.mxu0 %v89
    %138 = vmatpush1.msra.mxu0 %v88
    %139 = vmatprep.subr.mxu0 %v93
    %140 = vmatpush1.msra.mxu0 %v92
    %141 = vmatprep.subr.mxu0 0.0
    %142 = vmatpush1.msra.mxu0 0.0
    %143 = vmatprep.subr.mxu0 0.0
    %144 = vmatpush1.msra.mxu0 0.0
    %145 = vmatprep.subr.mxu0 0.0
    %146 = vmatpush1.msra.mxu0 0.0
    %147 = vmatprep.subr.mxu0 0.0
    %148 = vmatpush1.msra.mxu0 0.0
    %149 = vmatprep.subr.mxu0 0.0
    %150 = vmatpush1.msra.mxu0 0.0
    %151 = vmatprep.subr.mxu0 0.0
    %152 = vmatpush1.msra.mxu0 0.0
    %153 = vmatprep.subr.mxu0 0.0
    %154 = vmatpush1.msra.mxu0 0.0
    %155 = vmatprep.subr.mxu0 0.0
    %156 = vmatpush1.msra.mxu0 0.0
    %157 = vmatprep.subr.mxu0 0.0
    %158 = vmatpush1.msra.mxu0 0.0
    %159 = vmatprep.subr.mxu0 0.0
    %160 = vmatpush1.msra.mxu0 0.0
    %161 = vmatprep.subr.mxu0 0.0
    %162 = vmatpush1.msra.mxu0 0.0
    %163 = vmatprep.subr.mxu0 0.0
    %164 = vmatpush1.msra.mxu0 0.0
    %165 = vmatprep.subr.mxu0 0.0
    %166 = vmatpush1.msra.mxu0 0.0
    %167 = vmatprep.subr.mxu0 0.0
    %168 = vmatpush1.msra.mxu0 0.0
    %169 = vmatprep.subr.mxu0 0.0
    %170 = vmatpush1.msra.mxu0 0.0
    %171 = vmatprep.subr.mxu0 0.0
    %172 = vmatpush1.msra.mxu0 0.0
    %173 = vmatprep.subr.mxu0 0.0
    %174 = vmatpush1.msra.mxu0 0.0
    %175 = vmatprep.subr.mxu0 0.0
    %176 = vmatpush1.msra.mxu0 0.0
    %177 = vmatprep.subr.mxu0 0.0
    %178 = vmatpush1.msra.mxu0 0.0
    %179 = vmatprep.subr.mxu0 0.0
    %180 = vmatpush1.msra.mxu0 0.0
    %181 = vmatprep.subr.mxu0 0.0
    %182 = vmatpush1.msra.mxu0 0.0
    %183 = vmatprep.subr.mxu0 0.0
    %184 = vmatpush1.msra.mxu0 0.0
    %185 = vmatprep.subr.mxu0 0.0
    %186 = vmatpush1.msra.mxu0 0.0
    %187 = vmatprep.subr.mxu0 0.0
    %188 = vmatpush1.msra.mxu0 0.0
    %189 = vmatprep.mubr.f32.mxu0 0.0
    %190 = vmatmul.mubr.f32.gmra.mrb[0].mxu0 %v120
    %v191 = vpop.f32.mrb[0].mxu0
    %v192 = vadd.f32 %v101, %v191
    %v193 = vpop.f32.mrb[0].mxu0
    %v194 = vadd.f32 %v105, %v193
    %195 = vmatprep.mubr.f32.mxu0 0.0
    %196 = vmatmul.mubr.f32.gmra.mrb[0].mxu0 %v123
    %v197 = vpop.f32.mrb[0].mxu0
    %v198 = vadd.f32 %v101, %v197
    %v199 = vpop.f32.mrb[0].mxu0
    %v200 = vadd.f32 %v105, %v199
    %201 = vdwg.mxu0
    %202 = vmatprep.subr.mxu0 %v67
    %203 = vmatpush1.msra.mxu0 %v66
    %204 = vmatprep.subr.mxu0 %v71
    %205 = vmatpush1.msra.mxu0 %v70
    %206 = vmatprep.subr.mxu0 %v75
    %207 = vmatpush1.msra.mxu0 %v74
    %208 = vmatprep.subr.mxu0 %v79
    %209 = vmatpush1.msra.mxu0 %v78
    %210 = vmatprep.subr.mxu0 %v83
    %211 = vmatpush1.msra.mxu0 %v82
    %212 = vmatprep.subr.mxu0 %v87
    %213 = vmatpush1.msra.mxu0 %v86
    %214 = vmatprep.subr.mxu0 %v91
    %215 = vmatpush1.msra.mxu0 %v90
    %216 = vmatprep.subr.mxu0 %v95
    %217 = vmatpush1.msra.mxu0 %v94
    %218 = vmatprep.subr.mxu0 0.0
    %219 = vmatpush1.msra.mxu0 0.0
    %220 = vmatprep.subr.mxu0 0.0
    %221 = vmatpush1.msra.mxu0 0.0
    %222 = vmatprep.subr.mxu0 0.0
    %223 = vmatpush1.msra.mxu0 0.0
    %224 = vmatprep.subr.mxu0 0.0
    %225 = vmatpush1.msra.mxu0 0.0
    %226 = vmatprep.subr.mxu0 0.0
    %227 = vmatpush1.msra.mxu0 0.0
    %228 = vmatprep.subr.mxu0 0.0
    %229 = vmatpush1.msra.mxu0 0.0
    %230 = vmatprep.subr.mxu0 0.0
    %231 = vmatpush1.msra.mxu0 0.0
    %232 = vmatprep.subr.mxu0 0.0
    %233 = vmatpush1.msra.mxu0 0.0
    %234 = vmatprep.subr.mxu0 0.0
    %235 = vmatpush1.msra.mxu0 0.0
    %236 = vmatprep.subr.mxu0 0.0
    %237 = vmatpush1.msra.mxu0 0.0
    %238 = vmatprep.subr.mxu0 0.0
    %239 = vmatpush1.msra.mxu0 0.0
    %240 = vmatprep.subr.mxu0 0.0
    %241 = vmatpush1.msra.mxu0 0.0
    %242 = vmatprep.subr.mxu0 0.0
    %243 = vmatpush1.msra.mxu0 0.0
    %244 = vmatprep.subr.mxu0 0.0
    %245 = vmatpush1.msra.mxu0 0.0
    %246 = vmatprep.subr.mxu0 0.0
    %247 = vmatpush1.msra.mxu0 0.0
    %248 = vmatprep.subr.mxu0 0.0
    %249 = vmatpush1.msra.mxu0 0.0
    %250 = vmatprep.subr.mxu0 0.0
    %251 = vmatpush1.msra.mxu0 0.0
    %252 = vmatprep.subr.mxu0 0.0
    %253 = vmatpush1.msra.mxu0 0.0
    %254 = vmatprep.subr.mxu0 0.0
    %255 = vmatpush1.msra.mxu0 0.0
    %256 = vmatprep.subr.mxu0 0.0
    %257 = vmatpush1.msra.mxu0 0.0
    %258 = vmatprep.subr.mxu0 0.0
    %259 = vmatpush1.msra.mxu0 0.0
    %260 = vmatprep.subr.mxu0 0.0
    %261 = vmatpush1.msra.mxu0 0.0
    %262 = vmatprep.subr.mxu0 0.0
    %263 = vmatpush1.msra.mxu0 0.0
    %264 = vmatprep.subr.mxu0 0.0
    %265 = vmatpush1.msra.mxu0 0.0
    %266 = vmatprep.mubr.f32.mxu0 0.0
    %267 = vmatmul.mubr.f32.gmra.mrb[0].mxu0 %v120
    %v268 = vpop.f32.mrb[0].mxu0
    %v269 = vadd.f32 %v109, %v268
    %v270 = vpop.f32.mrb[0].mxu0
    %v271 = vadd.f32 %v113, %v270
    %272 = vmatprep.mubr.f32.mxu0 0.0
    %273 = vmatmul.mubr.f32.gmra.mrb[0].mxu0 %v123
    %v274 = vpop.f32.mrb[0].mxu0
    %v275 = vadd.f32 %v109, %v274
    %v276 = vpop.f32.mrb[0].mxu0
    %v277 = vadd.f32 %v113, %v276
    %278 = vdwg.mxu0
    %v279 = vmax.f32 %v192, 0.0
    %v280 = vmax.f32 %v194, 0.0
    %v281 = vmax.f32 %v269, 0.0
    %v282 = vmax.f32 %v271, 0.0
    %v283 = vmax.f32 %v198, 0.0
    %v284 = vmax.f32 %v200, 0.0
    %v285 = vmax.f32 %v275, 0.0
    %v286 = vmax.f32 %v277, 0.0
    %v287 = vld [vmem:[#allocation7] sm:$0xff]
    %v288 = vld [vmem:[#allocation7 + $0x8] sm:$0xff]
    %v289 = vld [vmem:[#allocation7 + $0x10] sm:$0xff]
    %v290 = vld [vmem:[#allocation7 + $0x18] sm:$0xff]
    %v291 = vld [vmem:[#allocation7 + $0x20] sm:$0xff]
    %v292 = vld [vmem:[#allocation7 + $0x28] sm:$0xff]
    %v293 = vld [vmem:[#allocation7 + $0x30] sm:$0xff]
    %v294 = vld [vmem:[#allocation7 + $0x38] sm:$0xff]
    %v295 = vld [vmem:[#allocation7 + $0x40] sm:$0xff]
    %v296 = vld [vmem:[#allocation7 + $0x48] sm:$0xff]
    %v297 = vld [vmem:[#allocation7 + $0x50] sm:$0xff]
    %v298 = vld [vmem:[#allocation7 + $0x58] sm:$0xff]
    %v299 = vld [vmem:[#allocation7 + $0x60] sm:$0xff]
    %v300 = vld [vmem:[#allocation7 + $0x68] sm:$0xff]
    %v301 = vld [vmem:[#allocation7 + $0x70] sm:$0xff]
    %v302 = vld [vmem:[#allocation7 + $0x78] sm:$0xff]
    %v303 = vld [vmem:[#allocation7 + $0x80] sm:$0xff]
    %v304 = vld [vmem:[#allocation7 + $0x88] sm:$0xff]
    %v305 = vld [vmem:[#allocation7 + $0x90] sm:$0xff]
    %v306 = vld [vmem:[#allocation7 + $0x98] sm:$0xff]
    %v307 = vld [vmem:[#allocation7 + $0xa0] sm:$0xff]
    %v308 = vld [vmem:[#allocation7 + $0xa8] sm:$0xff]
    %v309 = vld [vmem:[#allocation7 + $0xb0] sm:$0xff]
    %v310 = vld [vmem:[#allocation7 + $0xb8] sm:$0xff]
    %v311 = vld [vmem:[#allocation7 + $0xc0] sm:$0xff]
    %v312 = vld [vmem:[#allocation7 + $0xc8] sm:$0xff]
    %v313 = vld [vmem:[#allocation7 + $0xd0] sm:$0xff]
    %v314 = vld [vmem:[#allocation7 + $0xd8] sm:$0xff]
    %v315 = vld [vmem:[#allocation7 + $0xe0] sm:$0xff]
    %v316 = vld [vmem:[#allocation7 + $0xe8] sm:$0xff]
    %v317 = vld [vmem:[#allocation7 + $0xf0] sm:$0xff]
    %v318 = vld [vmem:[#allocation7 + $0xf8] sm:$0xff]
    %v319 = vld [vmem:[#allocation7 + $0x100] sm:$0xff]
    %v320 = vld [vmem:[#allocation7 + $0x108] sm:$0xff]
    %v321 = vld [vmem:[#allocation7 + $0x110] sm:$0xff]
    %v322 = vld [vmem:[#allocation7 + $0x118] sm:$0xff]
    %v323 = vld [vmem:[#allocation7 + $0x120] sm:$0xff]
    %v324 = vld [vmem:[#allocation7 + $0x128] sm:$0xff]
    %v325 = vld [vmem:[#allocation7 + $0x130] sm:$0xff]
    %v326 = vld [vmem:[#allocation7 + $0x138] sm:$0xff]
    %v327 = vld [vmem:[#allocation7 + $0x140] sm:$0xff]
    %v328 = vld [vmem:[#allocation7 + $0x148] sm:$0xff]
    %v329 = vld [vmem:[#allocation7 + $0x150] sm:$0xff]
    %v330 = vld [vmem:[#allocation7 + $0x158] sm:$0xff]
    %v331 = vld [vmem:[#allocation7 + $0x160] sm:$0xff]
    %v332 = vld [vmem:[#allocation7 + $0x168] sm:$0xff]
    %v333 = vld [vmem:[#allocation7 + $0x170] sm:$0xff]
    %v334 = vld [vmem:[#allocation7 + $0x178] sm:$0xff]
    %v335 = vld [vmem:[#allocation7 + $0x180] sm:$0xff]
    %v336 = vld [vmem:[#allocation7 + $0x188] sm:$0xff]
    %v337 = vld [vmem:[#allocation7 + $0x190] sm:$0xff]
    %v338 = vld [vmem:[#allocation7 + $0x198] sm:$0xff]
    %v339 = vld [vmem:[#allocation7 + $0x1a0] sm:$0xff]
    %v340 = vld [vmem:[#allocation7 + $0x1a8] sm:$0xff]
    %v341 = vld [vmem:[#allocation7 + $0x1b0] sm:$0xff]
    %v342 = vld [vmem:[#allocation7 + $0x1b8] sm:$0xff]
    %v343 = vld [vmem:[#allocation7 + $0x1c0] sm:$0xff]
    %v344 = vld [vmem:[#allocation7 + $0x1c8] sm:$0xff]
    %v345 = vld [vmem:[#allocation7 + $0x1d0] sm:$0xff]
    %v346 = vld [vmem:[#allocation7 + $0x1d8] sm:$0xff]
    %v347 = vld [vmem:[#allocation7 + $0x1e0] sm:$0xff]
    %v348 = vld [vmem:[#allocation7 + $0x1e8] sm:$0xff]
    %v349 = vld [vmem:[#allocation7 + $0x1f0] sm:$0xff]
    %v350 = vld [vmem:[#allocation7 + $0x1f8] sm:$0xff]
    %v351 = vld [vmem:[#allocation7 + $0x200] sm:$0xff]
    %v352 = vld [vmem:[#allocation7 + $0x208] sm:$0xff]
    %v353 = vld [vmem:[#allocation7 + $0x210] sm:$0xff]
    %v354 = vld [vmem:[#allocation7 + $0x218] sm:$0xff]
    %v355 = vld [vmem:[#allocation7 + $0x220] sm:$0xff]
    %v356 = vld [vmem:[#allocation7 + $0x228] sm:$0xff]
    %v357 = vld [vmem:[#allocation7 + $0x230] sm:$0xff]
    %v358 = vld [vmem:[#allocation7 + $0x238] sm:$0xff]
    %v359 = vld [vmem:[#allocation7 + $0x240] sm:$0xff]
    %v360 = vld [vmem:[#allocation7 + $0x248] sm:$0xff]
    %v361 = vld [vmem:[#allocation7 + $0x250] sm:$0xff]
    %v362 = vld [vmem:[#allocation7 + $0x258] sm:$0xff]
    %v363 = vld [vmem:[#allocation7 + $0x260] sm:$0xff]
    %v364 = vld [vmem:[#allocation7 + $0x268] sm:$0xff]
    %v365 = vld [vmem:[#allocation7 + $0x270] sm:$0xff]
    %v366 = vld [vmem:[#allocation7 + $0x278] sm:$0xff]
    %v367 = vld [vmem:[#allocation7 + $0x280] sm:$0xff]
    %v368 = vld [vmem:[#allocation7 + $0x288] sm:$0xff]
    %v369 = vld [vmem:[#allocation7 + $0x290] sm:$0xff]
    %v370 = vld [vmem:[#allocation7 + $0x298] sm:$0xff]
    %v371 = vld [vmem:[#allocation7 + $0x2a0] sm:$0xff]
    %v372 = vld [vmem:[#allocation7 + $0x2a8] sm:$0xff]
    %v373 = vld [vmem:[#allocation7 + $0x2b0] sm:$0xff]
    %v374 = vld [vmem:[#allocation7 + $0x2b8] sm:$0xff]
    %v375 = vld [vmem:[#allocation7 + $0x2c0] sm:$0xff]
    %v376 = vld [vmem:[#allocation7 + $0x2c8] sm:$0xff]
    %v377 = vld [vmem:[#allocation7 + $0x2d0] sm:$0xff]
    %v378 = vld [vmem:[#allocation7 + $0x2d8] sm:$0xff]
    %v379 = vld [vmem:[#allocation7 + $0x2e0] sm:$0xff]
    %v380 = vld [vmem:[#allocation7 + $0x2e8] sm:$0xff]
    %v381 = vld [vmem:[#allocation7 + $0x2f0] sm:$0xff]
    %v382 = vld [vmem:[#allocation7 + $0x2f8] sm:$0xff]
    %v383 = vld [vmem:[#allocation7 + $0x300] sm:$0xff]
    %v384 = vld [vmem:[#allocation7 + $0x308] sm:$0xff]
    %v385 = vld [vmem:[#allocation7 + $0x310] sm:$0xff]
    %v386 = vld [vmem:[#allocation7 + $0x318] sm:$0xff]
    %v387 = vld [vmem:[#allocation7 + $0x320] sm:$0xff]
    %v388 = vld [vmem:[#allocation7 + $0x328] sm:$0xff]
    %v389 = vld [vmem:[#allocation7 + $0x330] sm:$0xff]
    %v390 = vld [vmem:[#allocation7 + $0x338] sm:$0xff]
    %v391 = vld [vmem:[#allocation7 + $0x340] sm:$0xff]
    %v392 = vld [vmem:[#allocation7 + $0x348] sm:$0xff]
    %v393 = vld [vmem:[#allocation7 + $0x350] sm:$0xff]
    %v394 = vld [vmem:[#allocation7 + $0x358] sm:$0xff]
    %v395 = vld [vmem:[#allocation7 + $0x360] sm:$0xff]
    %v396 = vld [vmem:[#allocation7 + $0x368] sm:$0xff]
    %v397 = vld [vmem:[#allocation7 + $0x370] sm:$0xff]
    %v398 = vld [vmem:[#allocation7 + $0x378] sm:$0xff]
    %v399 = vld [vmem:[#allocation7 + $0x380] sm:$0xff]
    %v400 = vld [vmem:[#allocation7 + $0x388] sm:$0xff]
    %v401 = vld [vmem:[#allocation7 + $0x390] sm:$0xff]
    %v402 = vld [vmem:[#allocation7 + $0x398] sm:$0xff]
    %v403 = vld [vmem:[#allocation7 + $0x3a0] sm:$0xff]
    %v404 = vld [vmem:[#allocation7 + $0x3a8] sm:$0xff]
    %v405 = vld [vmem:[#allocation7 + $0x3b0] sm:$0xff]
    %v406 = vld [vmem:[#allocation7 + $0x3b8] sm:$0xff]
    %v407 = vld [vmem:[#allocation7 + $0x3c0] sm:$0xff]
    %v408 = vld [vmem:[#allocation7 + $0x3c8] sm:$0xff]
    %v409 = vld [vmem:[#allocation7 + $0x3d0] sm:$0xff]
    %v410 = vld [vmem:[#allocation7 + $0x3d8] sm:$0xff]
    %v411 = vld [vmem:[#allocation7 + $0x3e0] sm:$0xff]
    %v412 = vld [vmem:[#allocation7 + $0x3e8] sm:$0xff]
    %v413 = vld [vmem:[#allocation7 + $0x3f0] sm:$0xff]
    %v414 = vld [vmem:[#allocation7 + $0x3f8] sm:$0xff]
    %v415 = vld [vmem:[#allocation7 + $0x400] sm:$0xff]
    %v416 = vld [vmem:[#allocation7 + $0x408] sm:$0xff]
    %v417 = vld [vmem:[#allocation7 + $0x410] sm:$0xff]
    %v418 = vld [vmem:[#allocation7 + $0x418] sm:$0xff]
    %v419 = vld [vmem:[#allocation7 + $0x420] sm:$0xff]
    %v420 = vld [vmem:[#allocation7 + $0x428] sm:$0xff]
    %v421 = vld [vmem:[#allocation7 + $0x430] sm:$0xff]
    %v422 = vld [vmem:[#allocation7 + $0x438] sm:$0xff]
    %v423 = vld [vmem:[#allocation7 + $0x440] sm:$0xff]
    %v424 = vld [vmem:[#allocation7 + $0x448] sm:$0xff]
    %v425 = vld [vmem:[#allocation7 + $0x450] sm:$0xff]
    %v426 = vld [vmem:[#allocation7 + $0x458] sm:$0xff]
    %v427 = vld [vmem:[#allocation7 + $0x460] sm:$0xff]
    %v428 = vld [vmem:[#allocation7 + $0x468] sm:$0xff]
    %v429 = vld [vmem:[#allocation7 + $0x470] sm:$0xff]
    %v430 = vld [vmem:[#allocation7 + $0x478] sm:$0xff]
    %v431 = vld [vmem:[#allocation7 + $0x480] sm:$0xff]
    %v432 = vld [vmem:[#allocation7 + $0x488] sm:$0xff]
    %v433 = vld [vmem:[#allocation7 + $0x490] sm:$0xff]
    %v434 = vld [vmem:[#allocation7 + $0x498] sm:$0xff]
    %v435 = vld [vmem:[#allocation7 + $0x4a0] sm:$0xff]
    %v436 = vld [vmem:[#allocation7 + $0x4a8] sm:$0xff]
    %v437 = vld [vmem:[#allocation7 + $0x4b0] sm:$0xff]
    %v438 = vld [vmem:[#allocation7 + $0x4b8] sm:$0xff]
    %v439 = vld [vmem:[#allocation7 + $0x4c0] sm:$0xff]
    %v440 = vld [vmem:[#allocation7 + $0x4c8] sm:$0xff]
    %v441 = vld [vmem:[#allocation7 + $0x4d0] sm:$0xff]
    %v442 = vld [vmem:[#allocation7 + $0x4d8] sm:$0xff]
    %v443 = vld [vmem:[#allocation7 + $0x4e0] sm:$0xff]
    %v444 = vld [vmem:[#allocation7 + $0x4e8] sm:$0xff]
    %v445 = vld [vmem:[#allocation7 + $0x4f0] sm:$0xff]
    %v446 = vld [vmem:[#allocation7 + $0x4f8] sm:$0xff]
    %v447 = vld [vmem:[#allocation7 + $0x500] sm:$0xff]
    %v448 = vld [vmem:[#allocation7 + $0x508] sm:$0xff]
    %v449 = vld [vmem:[#allocation7 + $0x510] sm:$0xff]
    %v450 = vld [vmem:[#allocation7 + $0x518] sm:$0xff]
    %v451 = vld [vmem:[#allocation7 + $0x520] sm:$0xff]
    %v452 = vld [vmem:[#allocation7 + $0x528] sm:$0xff]
    %v453 = vld [vmem:[#allocation7 + $0x530] sm:$0xff]
    %v454 = vld [vmem:[#allocation7 + $0x538] sm:$0xff]
    %v455 = vld [vmem:[#allocation7 + $0x540] sm:$0xff]
    %v456 = vld [vmem:[#allocation7 + $0x548] sm:$0xff]
    %v457 = vld [vmem:[#allocation7 + $0x550] sm:$0xff]
    %v458 = vld [vmem:[#allocation7 + $0x558] sm:$0xff]
    %v459 = vld [vmem:[#allocation7 + $0x560] sm:$0xff]
    %v460 = vld [vmem:[#allocation7 + $0x568] sm:$0xff]
    %v461 = vld [vmem:[#allocation7 + $0x570] sm:$0xff]
    %v462 = vld [vmem:[#allocation7 + $0x578] sm:$0xff]
    %v463 = vld [vmem:[#allocation7 + $0x580] sm:$0xff]
    %v464 = vld [vmem:[#allocation7 + $0x588] sm:$0xff]
    %v465 = vld [vmem:[#allocation7 + $0x590] sm:$0xff]
    %v466 = vld [vmem:[#allocation7 + $0x598] sm:$0xff]
    %v467 = vld [vmem:[#allocation7 + $0x5a0] sm:$0xff]
    %v468 = vld [vmem:[#allocation7 + $0x5a8] sm:$0xff]
    %v469 = vld [vmem:[#allocation7 + $0x5b0] sm:$0xff]
    %v470 = vld [vmem:[#allocation7 + $0x5b8] sm:$0xff]
    %v471 = vld [vmem:[#allocation7 + $0x5c0] sm:$0xff]
    %v472 = vld [vmem:[#allocation7 + $0x5c8] sm:$0xff]
    %v473 = vld [vmem:[#allocation7 + $0x5d0] sm:$0xff]
    %v474 = vld [vmem:[#allocation7 + $0x5d8] sm:$0xff]
    %v475 = vld [vmem:[#allocation7 + $0x5e0] sm:$0xff]
    %v476 = vld [vmem:[#allocation7 + $0x5e8] sm:$0xff]
    %v477 = vld [vmem:[#allocation7 + $0x5f0] sm:$0xff]
    %v478 = vld [vmem:[#allocation7 + $0x5f8] sm:$0xff]
    %v479 = vld [vmem:[#allocation7 + $0x600] sm:$0xff]
    %v480 = vld [vmem:[#allocation7 + $0x608] sm:$0xff]
    %v481 = vld [vmem:[#allocation7 + $0x610] sm:$0xff]
    %v482 = vld [vmem:[#allocation7 + $0x618] sm:$0xff]
    %v483 = vld [vmem:[#allocation7 + $0x620] sm:$0xff]
    %v484 = vld [vmem:[#allocation7 + $0x628] sm:$0xff]
    %v485 = vld [vmem:[#allocation7 + $0x630] sm:$0xff]
    %v486 = vld [vmem:[#allocation7 + $0x638] sm:$0xff]
    %v487 = vld [vmem:[#allocation7 + $0x640] sm:$0xff]
    %v488 = vld [vmem:[#allocation7 + $0x648] sm:$0xff]
    %v489 = vld [vmem:[#allocation7 + $0x650] sm:$0xff]
    %v490 = vld [vmem:[#allocation7 + $0x658] sm:$0xff]
    %v491 = vld [vmem:[#allocation7 + $0x660] sm:$0xff]
    %v492 = vld [vmem:[#allocation7 + $0x668] sm:$0xff]
    %v493 = vld [vmem:[#allocation7 + $0x670] sm:$0xff]
    %v494 = vld [vmem:[#allocation7 + $0x678] sm:$0xff]
    %v495 = vld [vmem:[#allocation7 + $0x680] sm:$0xff]
    %v496 = vld [vmem:[#allocation7 + $0x688] sm:$0xff]
    %v497 = vld [vmem:[#allocation7 + $0x690] sm:$0xff]
    %v498 = vld [vmem:[#allocation7 + $0x698] sm:$0xff]
    %v499 = vld [vmem:[#allocation7 + $0x6a0] sm:$0xff]
    %v500 = vld [vmem:[#allocation7 + $0x6a8] sm:$0xff]
    %v501 = vld [vmem:[#allocation7 + $0x6b0] sm:$0xff]
    %v502 = vld [vmem:[#allocation7 + $0x6b8] sm:$0xff]
    %v503 = vld [vmem:[#allocation7 + $0x6c0] sm:$0xff]
    %v504 = vld [vmem:[#allocation7 + $0x6c8] sm:$0xff]
    %v505 = vld [vmem:[#allocation7 + $0x6d0] sm:$0xff]
    %v506 = vld [vmem:[#allocation7 + $0x6d8] sm:$0xff]
    %v507 = vld [vmem:[#allocation7 + $0x6e0] sm:$0xff]
    %v508 = vld [vmem:[#allocation7 + $0x6e8] sm:$0xff]
    %v509 = vld [vmem:[#allocation7 + $0x6f0] sm:$0xff]
    %v510 = vld [vmem:[#allocation7 + $0x6f8] sm:$0xff]
    %v511 = vld [vmem:[#allocation7 + $0x700] sm:$0xff]
    %v512 = vld [vmem:[#allocation7 + $0x708] sm:$0xff]
    %v513 = vld [vmem:[#allocation7 + $0x710] sm:$0xff]
    %v514 = vld [vmem:[#allocation7 + $0x718] sm:$0xff]
    %v515 = vld [vmem:[#allocation7 + $0x720] sm:$0xff]
    %v516 = vld [vmem:[#allocation7 + $0x728] sm:$0xff]
    %v517 = vld [vmem:[#allocation7 + $0x730] sm:$0xff]
    %v518 = vld [vmem:[#allocation7 + $0x738] sm:$0xff]
    %v519 = vld [vmem:[#allocation7 + $0x740] sm:$0xff]
    %v520 = vld [vmem:[#allocation7 + $0x748] sm:$0xff]
    %v521 = vld [vmem:[#allocation7 + $0x750] sm:$0xff]
    %v522 = vld [vmem:[#allocation7 + $0x758] sm:$0xff]
    %v523 = vld [vmem:[#allocation7 + $0x760] sm:$0xff]
    %v524 = vld [vmem:[#allocation7 + $0x768] sm:$0xff]
    %v525 = vld [vmem:[#allocation7 + $0x770] sm:$0xff]
    %v526 = vld [vmem:[#allocation7 + $0x778] sm:$0xff]
    %v527 = vld [vmem:[#allocation7 + $0x780] sm:$0xff]
    %v528 = vld [vmem:[#allocation7 + $0x788] sm:$0xff]
    %v529 = vld [vmem:[#allocation7 + $0x790] sm:$0xff]
    %v530 = vld [vmem:[#allocation7 + $0x798] sm:$0xff]
    %v531 = vld [vmem:[#allocation7 + $0x7a0] sm:$0xff]
    %v532 = vld [vmem:[#allocation7 + $0x7a8] sm:$0xff]
    %v533 = vld [vmem:[#allocation7 + $0x7b0] sm:$0xff]
    %v534 = vld [vmem:[#allocation7 + $0x7b8] sm:$0xff]
    %v535 = vld [vmem:[#allocation7 + $0x7c0] sm:$0xff]
    %v536 = vld [vmem:[#allocation7 + $0x7c8] sm:$0xff]
    %v537 = vld [vmem:[#allocation7 + $0x7d0] sm:$0xff]
    %v538 = vld [vmem:[#allocation7 + $0x7d8] sm:$0xff]
    %v539 = vld [vmem:[#allocation7 + $0x7e0] sm:$0xff]
    %v540 = vld [vmem:[#allocation7 + $0x7e8] sm:$0xff]
    %v541 = vld [vmem:[#allocation7 + $0x7f0] sm:$0xff]
    %v542 = vld [vmem:[#allocation7 + $0x7f8] sm:$0xff]
    %v543 = vld [vmem:[%s4] sm:$0xf]
    %v545 = vlaneseq
    %v546 = vshrl.u32 %v545, 7
    %v547 = vsub.s32 0, %v546
    %v548 = vrot.slane %v543, %v547
    %v549 = vlaneseq
    %v550 = vshrl.u32 %v549, 7
    %v551 = vsub.s32 1, %v550
    %v552 = vrot.slane %v543, %v551
    %v553 = vlaneseq
    %v554 = vshrl.u32 %v553, 7
    %v555 = vsub.s32 2, %v554
    %v556 = vrot.slane %v543, %v555
    %v557 = vlaneseq
    %v558 = vshrl.u32 %v557, 7
    %v559 = vsub.s32 3, %v558
    %v560 = vrot.slane %v543, %v559
    %565 = vmatprep.subr.mxu0 %v288
    %566 = vmatpush1.msra.mxu0 %v287
    %567 = vmatprep.subr.mxu0 %v292
    %568 = vmatpush1.msra.mxu0 %v291
    %569 = vmatprep.subr.mxu0 %v296
    %570 = vmatpush1.msra.mxu0 %v295
    %571 = vmatprep.subr.mxu0 %v300
    %572 = vmatpush1.msra.mxu0 %v299
    %573 = vmatprep.subr.mxu0 %v304
    %574 = vmatpush1.msra.mxu0 %v303
    %575 = vmatprep.subr.mxu0 %v308
    %576 = vmatpush1.msra.mxu0 %v307
    %577 = vmatprep.subr.mxu0 %v312
    %578 = vmatpush1.msra.mxu0 %v311
    %579 = vmatprep.subr.mxu0 %v316
    %580 = vmatpush1.msra.mxu0 %v315
    %581 = vmatprep.subr.mxu0 %v320
    %582 = vmatpush1.msra.mxu0 %v319
    %583 = vmatprep.subr.mxu0 %v324
    %584 = vmatpush1.msra.mxu0 %v323
    %585 = vmatprep.subr.mxu0 %v328
    %586 = vmatpush1.msra.mxu0 %v327
    %587 = vmatprep.subr.mxu0 %v332
    %588 = vmatpush1.msra.mxu0 %v331
    %589 = vmatprep.subr.mxu0 %v336
    %590 = vmatpush1.msra.mxu0 %v335
    %591 = vmatprep.subr.mxu0 %v340
    %592 = vmatpush1.msra.mxu0 %v339
    %593 = vmatprep.subr.mxu0 %v344
    %594 = vmatpush1.msra.mxu0 %v343
    %595 = vmatprep.subr.mxu0 %v348
    %596 = vmatpush1.msra.mxu0 %v347
    %597 = vmatprep.subr.mxu0 %v352
    %598 = vmatpush1.msra.mxu0 %v351
    %599 = vmatprep.subr.mxu0 %v356
    %600 = vmatpush1.msra.mxu0 %v355
    %601 = vmatprep.subr.mxu0 %v360
    %602 = vmatpush1.msra.mxu0 %v359
    %603 = vmatprep.subr.mxu0 %v364
    %604 = vmatpush1.msra.mxu0 %v363
    %605 = vmatprep.subr.mxu0 %v368
    %606 = vmatpush1.msra.mxu0 %v367
    %607 = vmatprep.subr.mxu0 %v372
    %608 = vmatpush1.msra.mxu0 %v371
    %609 = vmatprep.subr.mxu0 %v376
    %610 = vmatpush1.msra.mxu0 %v375
    %611 = vmatprep.subr.mxu0 %v380
    %612 = vmatpush1.msra.mxu0 %v379
    %613 = vmatprep.subr.mxu0 %v384
    %614 = vmatpush1.msra.mxu0 %v383
    %615 = vmatprep.subr.mxu0 %v388
    %616 = vmatpush1.msra.mxu0 %v387
    %617 = vmatprep.subr.mxu0 %v392
    %618 = vmatpush1.msra.mxu0 %v391
    %619 = vmatprep.subr.mxu0 %v396
    %620 = vmatpush1.msra.mxu0 %v395
    %621 = vmatprep.subr.mxu0 %v400
    %622 = vmatpush1.msra.mxu0 %v399
    %623 = vmatprep.subr.mxu0 %v404
    %624 = vmatpush1.msra.mxu0 %v403
    %625 = vmatprep.subr.mxu0 %v408
    %626 = vmatpush1.msra.mxu0 %v407
    %627 = vmatprep.subr.mxu0 %v412
    %628 = vmatpush1.msra.mxu0 %v411
    %629 = vmatprep.mubr.f32.mxu0 %v280
    %630 = vmatmul.mubr.f32.gmra.mrb[0].mxu0 %v279
    %v631 = vpop.f32.mrb[0].mxu0
    %v632 = vadd.f32 %v548, %v631
    %v633 = vpop.f32.mrb[0].mxu0
    %v634 = vadd.f32 %v552, %v633
    %635 = vmatprep.mubr.f32.mxu0 %v284
    %636 = vmatmul.mubr.f32.gmra.mrb[0].mxu0 %v283
    %v637 = vpop.f32.mrb[0].mxu0
    %v638 = vadd.f32 %v548, %v637
    %v639 = vpop.f32.mrb[0].mxu0
    %v640 = vadd.f32 %v552, %v639
    %641 = vdwg.mxu0
    %642 = vmatprep.subr.mxu0 %v416
    %643 = vmatpush1.msra.mxu0 %v415
    %644 = vmatprep.subr.mxu0 %v420
    %645 = vmatpush1.msra.mxu0 %v419
    %646 = vmatprep.subr.mxu0 %v424
    %647 = vmatpush1.msra.mxu0 %v423
    %648 = vmatprep.subr.mxu0 %v428
    %649 = vmatpush1.msra.mxu0 %v427
    %650 = vmatprep.subr.mxu0 %v432
    %651 = vmatpush1.msra.mxu0 %v431
    %652 = vmatprep.subr.mxu0 %v436
    %653 = vmatpush1.msra.mxu0 %v435
    %654 = vmatprep.subr.mxu0 %v440
    %655 = vmatpush1.msra.mxu0 %v439
    %656 = vmatprep.subr.mxu0 %v444
    %657 = vmatpush1.msra.mxu0 %v443
    %658 = vmatprep.subr.mxu0 %v448
    %659 = vmatpush1.msra.mxu0 %v447
    %660 = vmatprep.subr.mxu0 %v452
    %661 = vmatpush1.msra.mxu0 %v451
    %662 = vmatprep.subr.mxu0 %v456
    %663 = vmatpush1.msra.mxu0 %v455
    %664 = vmatprep.subr.mxu0 %v460
    %665 = vmatpush1.msra.mxu0 %v459
    %666 = vmatprep.subr.mxu0 %v464
    %667 = vmatpush1.msra.mxu0 %v463
    %668 = vmatprep.subr.mxu0 %v468
    %669 = vmatpush1.msra.mxu0 %v467
    %670 = vmatprep.subr.mxu0 %v472
    %671 = vmatpush1.msra.mxu0 %v471
    %672 = vmatprep.subr.mxu0 %v476
    %673 = vmatpush1.msra.mxu0 %v475
    %674 = vmatprep.subr.mxu0 %v480
    %675 = vmatpush1.msra.mxu0 %v479
    %676 = vmatprep.subr.mxu0 %v484
    %677 = vmatpush1.msra.mxu0 %v483
    %678 = vmatprep.subr.mxu0 %v488
    %679 = vmatpush1.msra.mxu0 %v487
    %680 = vmatprep.subr.mxu0 %v492
    %681 = vmatpush1.msra.mxu0 %v491
    %682 = vmatprep.subr.mxu0 %v496
    %683 = vmatpush1.msra.mxu0 %v495
    %684 = vmatprep.subr.mxu0 %v500
    %685 = vmatpush1.msra.mxu0 %v499
    %686 = vmatprep.subr.mxu0 %v504
    %687 = vmatpush1.msra.mxu0 %v503
    %688 = vmatprep.subr.mxu0 %v508
    %689 = vmatpush1.msra.mxu0 %v507
    %690 = vmatprep.subr.mxu0 %v512
    %691 = vmatpush1.msra.mxu0 %v511
    %692 = vmatprep.subr.mxu0 %v516
    %693 = vmatpush1.msra.mxu0 %v515
    %694 = vmatprep.subr.mxu0 %v520
    %695 = vmatpush1.msra.mxu0 %v519
    %696 = vmatprep.subr.mxu0 %v524
    %697 = vmatpush1.msra.mxu0 %v523
    %698 = vmatprep.subr.mxu0 %v528
    %699 = vmatpush1.msra.mxu0 %v527
    %700 = vmatprep.subr.mxu0 %v532
    %701 = vmatpush1.msra.mxu0 %v531
    %702 = vmatprep.subr.mxu0 %v536
    %703 = vmatpush1.msra.mxu0 %v535
    %704 = vmatprep.subr.mxu0 %v540
    %705 = vmatpush1.msra.mxu0 %v539
    %706 = vmatprep.mubr.f32.mxu0 %v282
    %707 = vmatmul.mubr.f32.gmra.mrb[0].mxu0 %v281
    %v708 = vpop.f32.mrb[0].mxu0
    %v709 = vadd.f32 %v632, %v708
    %v710 = vpop.f32.mrb[0].mxu0
    %v711 = vadd.f32 %v634, %v710
    %712 = vmatprep.mubr.f32.mxu0 %v286
    %713 = vmatmul.mubr.f32.gmra.mrb[0].mxu0 %v285
    %v714 = vpop.f32.mrb[0].mxu0
    %v715 = vadd.f32 %v638, %v714
    %v716 = vpop.f32.mrb[0].mxu0
    %v717 = vadd.f32 %v640, %v716
    %718 = vdwg.mxu0
    %719 = vmatprep.subr.mxu0 %v290
    %720 = vmatpush1.msra.mxu0 %v289
    %721 = vmatprep.subr.mxu0 %v294
    %722 = vmatpush1.msra.mxu0 %v293
    %723 = vmatprep.subr.mxu0 %v298
    %724 = vmatpush1.msra.mxu0 %v297
    %725 = vmatprep.subr.mxu0 %v302
    %726 = vmatpush1.msra.mxu0 %v301
    %727 = vmatprep.subr.mxu0 %v306
    %728 = vmatpush1.msra.mxu0 %v305
    %729 = vmatprep.subr.mxu0 %v310
    %730 = vmatpush1.msra.mxu0 %v309
    %731 = vmatprep.subr.mxu0 %v314
    %732 = vmatpush1.msra.mxu0 %v313
    %733 = vmatprep.subr.mxu0 %v318
    %734 = vmatpush1.msra.mxu0 %v317
    %735 = vmatprep.subr.mxu0 %v322
    %736 = vmatpush1.msra.mxu0 %v321
    %737 = vmatprep.subr.mxu0 %v326
    %738 = vmatpush1.msra.mxu0 %v325
    %739 = vmatprep.subr.mxu0 %v330
    %740 = vmatpush1.msra.mxu0 %v329
    %741 = vmatprep.subr.mxu0 %v334
    %742 = vmatpush1.msra.mxu0 %v333
    %743 = vmatprep.subr.mxu0 %v338
    %744 = vmatpush1.msra.mxu0 %v337
    %745 = vmatprep.subr.mxu0 %v342
    %746 = vmatpush1.msra.mxu0 %v341
    %747 = vmatprep.subr.mxu0 %v346
    %748 = vmatpush1.msra.mxu0 %v345
    %749 = vmatprep.subr.mxu0 %v350
    %750 = vmatpush1.msra.mxu0 %v349
    %751 = vmatprep.subr.mxu0 %v354
    %752 = vmatpush1.msra.mxu0 %v353
    %753 = vmatprep.subr.mxu0 %v358
    %754 = vmatpush1.msra.mxu0 %v357
    %755 = vmatprep.subr.mxu0 %v362
    %756 = vmatpush1.msra.mxu0 %v361
    %757 = vmatprep.subr.mxu0 %v366
    %758 = vmatpush1.msra.mxu0 %v365
    %759 = vmatprep.subr.mxu0 %v370
    %760 = vmatpush1.msra.mxu0 %v369
    %761 = vmatprep.subr.mxu0 %v374
    %762 = vmatpush1.msra.mxu0 %v373
    %763 = vmatprep.subr.mxu0 %v378
    %764 = vmatpush1.msra.mxu0 %v377
    %765 = vmatprep.subr.mxu0 %v382
    %766 = vmatpush1.msra.mxu0 %v381
    %767 = vmatprep.subr.mxu0 %v386
    %768 = vmatpush1.msra.mxu0 %v385
    %769 = vmatprep.subr.mxu0 %v390
    %770 = vmatpush1.msra.mxu0 %v389
    %771 = vmatprep.subr.mxu0 %v394
    %772 = vmatpush1.msra.mxu0 %v393
    %773 = vmatprep.subr.mxu0 %v398
    %774 = vmatpush1.msra.mxu0 %v397
    %775 = vmatprep.subr.mxu0 %v402
    %776 = vmatpush1.msra.mxu0 %v401
    %777 = vmatprep.subr.mxu0 %v406
    %778 = vmatpush1.msra.mxu0 %v405
    %779 = vmatprep.subr.mxu0 %v410
    %780 = vmatpush1.msra.mxu0 %v409
    %781 = vmatprep.subr.mxu0 %v414
    %782 = vmatpush1.msra.mxu0 %v413
    %783 = vmatprep.mubr.f32.mxu0 %v280
    %784 = vmatmul.mubr.f32.gmra.mrb[0].mxu0 %v279
    %v785 = vpop.f32.mrb[0].mxu0
    %v786 = vadd.f32 %v556, %v785
    %v787 = vpop.f32.mrb[0].mxu0
    %v788 = vadd.f32 %v560, %v787
    %789 = vmatprep.mubr.f32.mxu0 %v284
    %790 = vmatmul.mubr.f32.gmra.mrb[0].mxu0 %v283
    %v791 = vpop.f32.mrb[0].mxu0
    %v792 = vadd.f32 %v556, %v791
    %v793 = vpop.f32.mrb[0].mxu0
    %v794 = vadd.f32 %v560, %v793
    %795 = vdwg.mxu0
    %796 = vmatprep.subr.mxu0 %v418
    %797 = vmatpush1.msra.mxu0 %v417
    %798 = vmatprep.subr.mxu0 %v422
    %799 = vmatpush1.msra.mxu0 %v421
    %800 = vmatprep.subr.mxu0 %v426
    %801 = vmatpush1.msra.mxu0 %v425
    %802 = vmatprep.subr.mxu0 %v430
    %803 = vmatpush1.msra.mxu0 %v429
    %804 = vmatprep.subr.mxu0 %v434
    %805 = vmatpush1.msra.mxu0 %v433
    %806 = vmatprep.subr.mxu0 %v438
    %807 = vmatpush1.msra.mxu0 %v437
    %808 = vmatprep.subr.mxu0 %v442
    %809 = vmatpush1.msra.mxu0 %v441
    %810 = vmatprep.subr.mxu0 %v446
    %811 = vmatpush1.msra.mxu0 %v445
    %812 = vmatprep.subr.mxu0 %v450
    %813 = vmatpush1.msra.mxu0 %v449
    %814 = vmatprep.subr.mxu0 %v454
    %815 = vmatpush1.msra.mxu0 %v453
    %816 = vmatprep.subr.mxu0 %v458
    %817 = vmatpush1.msra.mxu0 %v457
    %818 = vmatprep.subr.mxu0 %v462
    %819 = vmatpush1.msra.mxu0 %v461
    %820 = vmatprep.subr.mxu0 %v466
    %821 = vmatpush1.msra.mxu0 %v465
    %822 = vmatprep.subr.mxu0 %v470
    %823 = vmatpush1.msra.mxu0 %v469
    %824 = vmatprep.subr.mxu0 %v474
    %825 = vmatpush1.msra.mxu0 %v473
    %826 = vmatprep.subr.mxu0 %v478
    %827 = vmatpush1.msra.mxu0 %v477
    %828 = vmatprep.subr.mxu0 %v482
    %829 = vmatpush1.msra.mxu0 %v481
    %830 = vmatprep.subr.mxu0 %v486
    %831 = vmatpush1.msra.mxu0 %v485
    %832 = vmatprep.subr.mxu0 %v490
    %833 = vmatpush1.msra.mxu0 %v489
    %834 = vmatprep.subr.mxu0 %v494
    %835 = vmatpush1.msra.mxu0 %v493
    %836 = vmatprep.subr.mxu0 %v498
    %837 = vmatpush1.msra.mxu0 %v497
    %838 = vmatprep.subr.mxu0 %v502
    %839 = vmatpush1.msra.mxu0 %v501
    %840 = vmatprep.subr.mxu0 %v506
    %841 = vmatpush1.msra.mxu0 %v505
    %842 = vmatprep.subr.mxu0 %v510
    %843 = vmatpush1.msra.mxu0 %v509
    %844 = vmatprep.subr.mxu0 %v514
    %845 = vmatpush1.msra.mxu0 %v513
    %846 = vmatprep.subr.mxu0 %v518
    %847 = vmatpush1.msra.mxu0 %v517
    %848 = vmatprep.subr.mxu0 %v522
    %849 = vmatpush1.msra.mxu0 %v521
    %850 = vmatprep.subr.mxu0 %v526
    %851 = vmatpush1.msra.mxu0 %v525
    %852 = vmatprep.subr.mxu0 %v530
    %853 = vmatpush1.msra.mxu0 %v529
    %854 = vmatprep.subr.mxu0 %v534
    %855 = vmatpush1.msra.mxu0 %v533
    %856 = vmatprep.subr.mxu0 %v538
    %857 = vmatpush1.msra.mxu0 %v537
    %858 = vmatprep.subr.mxu0 %v542
    %859 = vmatpush1.msra.mxu0 %v541
    %860 = vmatprep.mubr.f32.mxu0 %v282
    %861 = vmatmul.mubr.f32.gmra.mrb[0].mxu0 %v281
    %v862 = vpop.f32.mrb[0].mxu0
    %v863 = vadd.f32 %v786, %v862
    %v864 = vpop.f32.mrb[0].mxu0
    %v865 = vadd.f32 %v788, %v864
    %866 = vmatprep.mubr.f32.mxu0 %v286
    %867 = vmatmul.mubr.f32.gmra.mrb[0].mxu0 %v285
    %v868 = vpop.f32.mrb[0].mxu0
    %v869 = vadd.f32 %v792, %v868
    %v870 = vpop.f32.mrb[0].mxu0
    %v871 = vadd.f32 %v794, %v870
    %872 = vdwg.mxu0
    %v873 = vmax.f32 %v709, 0.0
    %v874 = vmax.f32 %v711, 0.0
    %v875 = vmax.f32 %v863, 0.0
    %v876 = vmax.f32 %v865, 0.0
    %v877 = vmax.f32 %v715, 0.0
    %v878 = vmax.f32 %v717, 0.0
    %v879 = vmax.f32 %v869, 0.0
    %v880 = vmax.f32 %v871, 0.0
    %881 = vst [vmem:[#allocation8] sm:$0xff] %v873
    %882 = vst [vmem:[#allocation8 + $0x8] sm:$0xff] %v874
    %883 = vst [vmem:[#allocation8 + $0x10] sm:$0xff] %v875
    %884 = vst [vmem:[#allocation8 + $0x18] sm:$0xff] %v876
    %885 = vst [vmem:[#allocation8 + $0x20] sm:$0xff] %v877
    %886 = vst [vmem:[#allocation8 + $0x28] sm:$0xff] %v878
    %887 = vst [vmem:[#allocation8 + $0x30] sm:$0xff] %v879
    %888 = vst [vmem:[#allocation8 + $0x38] sm:$0xff] %v880
    // Predicated region
    $region34: #{tpu_custom_call.1} parent=1 // pred_check
      _
    $region35: #{tpu_custom_call.1} parent=1 // pred_check_branch
      %890 = sbr.rel (0) target = $region37
    $region36: #{tpu_custom_call.1} parent=1 // pred_region
      %s892 = ssub.s32 1024, 1024
      %893 = vsyncadd [#allocation4], %s892
      %s894 = sshll.u32 [#allocation8], 4
      %s895 = int_to_ptr.vmem [resolvable:$true] %s894
      %900 = dma.vmem_to_hbm [thread:$0]  %s895, 1024, %s5, [#allocation4], 512, 512, 32
    $region37: #{tpu_custom_call.1} parent=1 // pred_fallthru
      _
    // Predicated region
    $region38: #{tpu_custom_call.1} parent=1 // pred_check
      _
    $region39: #{tpu_custom_call.1} parent=1 // pred_check_branch
      %902 = sbr.rel (0) target = $region41
    $region40: #{tpu_custom_call.1} parent=1 // pred_region
      %903 = dma.done [#allocation4], 1024
    $region41: #{tpu_custom_call.1} parent=1 // pred_fallthru
      _
    %904 = vsyncpa [#allocation3], 1
    %905 = vsyncpa [#allocation6], 1
    %906 = vsyncpa [#allocation4], 1

</llo_original>
